<compile_context>
chip_gen: v7x
topology: tpu7x:2x2x1
jax: 0.10.0
libtpu: 0.0.40
codegen_flags: <defaults>
</compile_context>

<pallas_src>
import functools

import jax
import jax.numpy as jnp
from jax.experimental import pallas as pl
from jax.experimental.pallas import tpu as pltpu

EPS = 1e-5
NEG_SLOPE = 0.2
LANE = 128


def _round_up(x, m):
    return (x + m - 1) // m * m


# --------------------------------------------------------------------------------------
# Phase 1: channel-major conv matmul + per-channel sum / sum-of-squares accumulation.
# stats_ref (written once at the last grid step): column 0 = scale, column 1 = shift,
# where scale = gamma * rsqrt(var + eps), shift = beta - mean * scale.
# --------------------------------------------------------------------------------------
def _stats_kernel(p_ref, w_ref, g_ref, b_ref, stats_ref, acc_s, acc_q, *, m_real):
    n = pl.program_id(0)
    m = pl.program_id(1)

    @pl.when(jnp.logical_and(n == 0, m == 0))
    def _init():
        acc_s[...] = jnp.zeros_like(acc_s)
        acc_q[...] = jnp.zeros_like(acc_q)

    # Channel-major conv tile on the MXU: (C_pad8, K) @ (K, TILE_M) -> (C_pad8, TILE_M).
    y = jnp.dot(w_ref[...], p_ref[...], preferred_element_type=jnp.float32)

    # Full-vreg VALU accumulation every step; the cross-lane (XLU) reduction is deferred
    # to the single finalize step below.  Zero-padded lane columns contribute exactly 0.
    acc_s[...] += y
    acc_q[...] += y * y

    last = jnp.logical_and(n == pl.num_programs(0) - 1,
                           m == pl.num_programs(1) - 1)

    @pl.when(last)
    def _finalize():
        inv_m = jnp.float32(1.0 / m_real)
        s = jnp.sum(acc_s[...], axis=1, keepdims=True)    # (C_pad8, 1)
        q = jnp.sum(acc_q[...], axis=1, keepdims=True)    # (C_pad8, 1)
        mean = s * inv_m
        # TODO(synk): E[x^2]-E[x]^2 cancels catastrophically for very large M or
        # |mean| >> std; switch to a shifted / two-pass formulation at scale.
        var = jnp.maximum(q * inv_m - mean * mean, 0.0)
        scale = g_ref[...] * jax.lax.rsqrt(var + jnp.float32(EPS))
        shift = b_ref[...] - mean * scale
        stats_ref[:, 0:1] = scale
        stats_ref[:, 1:2] = shift


# --------------------------------------------------------------------------------------
# Phase 2: re-materialize the (cheap, K=36) conv tile and apply the folded BN affine
# (single FMA with lane-broadcast scale/shift) + LeakyReLU.  Fully parallel over tiles.
# --------------------------------------------------------------------------------------
def _apply_kernel(p_ref, w_ref, stats_ref, o_ref):
    y = jnp.dot(w_ref[...], p_ref[...], preferred_element_type=jnp.float32)
    st = stats_ref[...]                              # (C_pad8, 2)
    z = y * st[:, 0:1] + st[:, 1:2]                  # folded BN FMA
    o_ref[...] = jnp.maximum(z, NEG_SLOPE * z).astype(o_ref.dtype)  # LeakyReLU(0.2)


def _im2col_T(x_nchw, kh, kw, stride, padding):
    """K-major conv patches: returns (N, C*kh*kw, OH*OW), OH, OW.
    Row (K) order: C_in outer, (kh, kw) inner -> matches OIHW weight.reshape(C_out, -1)."""
    N, C, H, W = x_nchw.shape
    xp = jnp.pad(x_nchw, ((0, 0), (0, 0), (padding, padding), (padding, padding)))
    OH = (H + 2 * padding - kh) // stride + 1
    OW = (W + 2 * padding - kw) // stride + 1
    cols = []
    for i in range(kh):
        for j in range(kw):
            cols.append(xp[:, :,
                           i:i + stride * (OH - 1) + 1:stride,
                           j:j + stride * (OW - 1) + 1:stride])
    p = jnp.stack(cols, axis=2)                      # (N, C, kh*kw, OH, OW)
    return p.reshape(N, C * kh * kw, OH * OW), OH, OW


def extra_layer_forward(x, conv_weight, bn_gamma, bn_beta, *, stride, padding,
                        compute_dtype=jnp.float32, tile_m=2048):
    """x: (N, C_in, H, W) NCHW.  conv_weight: (C_out, C_in, KH, KW) (PyTorch OIHW)."""
    assert tile_m % LANE == 0 and tile_m >= LANE
    N, C_in, H, W = x.shape
    C_out, _, KH, KW = conv_weight.shape
    K = C_in * KH * KW

    # Interim im2col-fusion step: build the KH*KW-duplicated patches already in the
    # compute dtype (halves the duplicated XLA-side HBM traffic on the bf16 path).
    x = x.astype(compute_dtype)

    patches, OH, OW = _im2col_T(x, KH, KW, stride, padding)   # (N, K, OHW)
    OHW = OH * OW
    m_real = N * OHW

    # ---- tiling: lane dim = spatial (multiple of 128), channels on sublanes ----------
    TILE_M = min(tile_m, _round_up(OHW, LANE))
    OHW_pad = _round_up(OHW, TILE_M)
    m_tiles = OHW_pad // TILE_M
    C_pad = _round_up(C_out, 8)

    patches_p = jnp.pad(patches, ((0, 0), (0, 0), (0, OHW_pad - OHW)))
    w_p = jnp.pad(conv_weight.reshape(C_out, K),
                  ((0, C_pad - C_out), (0, 0))).astype(compute_dtype)
    # Zero-padded gamma/beta => scale = shift = 0 for padded channels (kept invariant).
    gamma_p = jnp.pad(bn_gamma.astype(jnp.float32).reshape(C_out, 1),
                      ((0, C_pad - C_out), (0, 0)))
    beta_p = jnp.pad(bn_beta.astype(jnp.float32).reshape(C_out, 1),
                     ((0, C_pad - C_out), (0, 0)))

    # VMEM budget (double-buffered tiles + scratch), with headroom; trivially under the
    # v7x 64 MiB physical / 32 MiB scoped VMEM at these tile sizes.
    itemsize = jnp.dtype(compute_dtype).itemsize
    vmem_est = (2 * _round_up(K, 16) * TILE_M * itemsize      # patches (double-buffered)
                + 2 * C_pad * _round_up(K, LANE) * itemsize   # weight
                + 2 * C_pad * TILE_M * 4                      # output tile (phase 2)
                + 2 * C_pad * TILE_M * 4)                     # stats scratch (phase 1)
    vmem_limit = int(min(max(4 * vmem_est, 16 << 20), 32 << 20))

    # ---- phase 1: BN statistics (sequential reduction over all tiles) -----------------
    stats = pl.pallas_call(
        functools.partial(_stats_kernel, m_real=m_real),
        out_shape=jax.ShapeDtypeStruct((C_pad, 2), jnp.float32),
        grid=(N, m_tiles),
        in_specs=[
            pl.BlockSpec((None, K, TILE_M), lambda n, m: (n, 0, m)),   # patches tile
            pl.BlockSpec((C_pad, K), lambda n, m: (0, 0)),             # weight (resident)
            pl.BlockSpec((C_pad, 1), lambda n, m: (0, 0)),             # gamma
            pl.BlockSpec((C_pad, 1), lambda n, m: (0, 0)),             # beta
        ],
        out_specs=pl.BlockSpec((C_pad, 2), lambda n, m: (0, 0)),       # written once
        scratch_shapes=[pltpu.VMEM((C_pad, TILE_M), jnp.float32),      # sum accumulator
                        pltpu.VMEM((C_pad, TILE_M), jnp.float32)],     # sumsq accumulator
        compiler_params=pltpu.CompilerParams(
            dimension_semantics=("arbitrary", "arbitrary"),
            vmem_limit_bytes=vmem_limit),
    )(patches_p, w_p, gamma_p, beta_p)

    # ---- phase 2: apply folded BN + LeakyReLU (fully parallel over tiles) --------------
    # Note: if a profile shows exposed DMA here, pipeline_mode=pl.Buffered(3) on the
    # patches spec is a cheap follow-up (plenty of VMEM headroom on all generations).
    out = pl.pallas_call(
        _apply_kernel,
        out_shape=jax.ShapeDtypeStruct((N, C_pad, OHW_pad), jnp.float32),
        grid=(N, m_tiles),
        in_specs=[
            pl.BlockSpec((None, K, TILE_M), lambda n, m: (n, 0, m)),
            pl.BlockSpec((C_pad, K), lambda n, m: (0, 0)),
            pl.BlockSpec((C_pad, 2), lambda n, m: (0, 0)),
        ],
        out_specs=pl.BlockSpec((None, C_pad, TILE_M), lambda n, m: (n, 0, m)),
        compiler_params=pltpu.CompilerParams(
            dimension_semantics=("parallel", "parallel"),
            vmem_limit_bytes=vmem_limit),
    )(patches_p, w_p, stats)

    # Trim the (<=7 channel, <=TILE_M-1 lane) zero padding; no transpose needed --
    # the kernel already produced NC(HW) order.
    return out[:, :C_out, :OHW].reshape(N, C_out, OH, OW)


def _reference_forward(x, conv_weight, bn_gamma, bn_beta, *, stride, padding):
    """Pure-JAX reference mirroring the PyTorch module in training mode."""
    y = jax.lax.conv_general_dilated(
        x, conv_weight,
        window_strides=(stride, stride),
        padding=[(padding, padding), (padding, padding)],
        dimension_numbers=("NCHW", "OIHW", "NCHW"),
    )
    mean = jnp.mean(y, axis=(0, 2, 3), keepdims=True)
    var = jnp.mean((y - mean) ** 2, axis=(0, 2, 3), keepdims=True)
    y_hat = (y - mean) / jnp.sqrt(var + EPS)
    out = y_hat * bn_gamma.reshape(1, -1, 1, 1) + bn_beta.reshape(1, -1, 1, 1)
    return jnp.where(out >= 0.0, out, NEG_SLOPE * out)


if __name__ == "__main__":
    # Module hyperparameters (kept small).
    in_channels, out_channels = 4, 8
    kernel_size, stride, padding = 3, 2, 1
    N, H, W = 2, 16, 16

    key = jax.random.PRNGKey(0)
    k_x, k_w, k_g = jax.random.split(key, 3)

    x = jax.random.normal(k_x, (N, in_channels, H, W), dtype=jnp.float32)
    # conv.weight ~ N(0, 0.02), bias=False
    conv_weight = 0.02 * jax.random.normal(
        k_w, (out_channels, in_channels, kernel_size, kernel_size), dtype=jnp.float32)
    # bn.weight ~ N(1, 0.02), bn.bias = 0
    bn_gamma = 1.0 + 0.02 * jax.random.normal(k_g, (out_channels,), dtype=jnp.float32)
    bn_beta = jnp.zeros((out_channels,), dtype=jnp.float32)

    ref = _reference_forward(x, conv_weight, bn_gamma, bn_beta,
                             stride=stride, padding=padding)

    # Exact path (f32 MXU inputs): must match the reference tightly.
    out_f32 = extra_layer_forward(x, conv_weight, bn_gamma, bn_beta,
                                  stride=stride, padding=padding,
                                  compute_dtype=jnp.float32)
    out_f32 = jax.block_until_ready(out_f32)
    assert out_f32.shape == ref.shape == (N, out_channels, H // stride, W // stride)
    assert jnp.allclose(out_f32, ref, atol=1e-4, rtol=1e-4), "f32 kernel mismatch vs reference"

    # Fast path (bf16 MXU inputs + bf16 patches, f32 accumulate/epilogue); tolerance is
    # bf16-appropriate (batch stats are computed from bf16-rounded conv outputs).
    out_bf16 = extra_layer_forward(x, conv_weight, bn_gamma, bn_beta,
                                   stride=stride, padding=padding,
                                   compute_dtype=jnp.bfloat16)
    out_bf16 = jax.block_until_ready(out_bf16)
    assert float(jnp.max(jnp.abs(out_bf16 - ref))) < 5e-2, "bf16 kernel mismatch vs reference"

    # Multi-tile grid check (exercises cross-tile stats accumulation + lane tiling):
    # spatial 32 with tile_m=128 -> 2 spatial tiles per batch element.
    x2 = jax.random.normal(jax.random.PRNGKey(1), (N, in_channels, 32, 32),
                           dtype=jnp.float32)
    ref2 = _reference_forward(x2, conv_weight, bn_gamma, bn_beta,
                              stride=stride, padding=padding)
    out2 = extra_layer_forward(x2, conv_weight, bn_gamma, bn_beta,
                               stride=stride, padding=padding,
                               compute_dtype=jnp.float32, tile_m=128)
    out2 = jax.block_until_ready(out2)
    assert jnp.allclose(out2, ref2, atol=1e-4, rtol=1e-4), "multi-tile kernel mismatch"

    print("KERNEL_OK")
</pallas_src>

<mosaic_0001>
module attributes {stable_mosaic.version = 11 : i64} {
  func.func @_stats_kernel(%arg0: i32, %arg1: i32, %arg2: memref<1x36x128xf32, #tpu.memory_space<vmem>>, %arg3: memref<8x36xf32, #tpu.memory_space<vmem>>, %arg4: memref<8x1xf32, #tpu.memory_space<vmem>>, %arg5: memref<8x1xf32, #tpu.memory_space<vmem>>, %arg6: memref<8x2xf32, #tpu.memory_space<vmem>>, %arg7: memref<8x128xf32, #tpu.memory_space<vmem>>, %arg8: memref<8x128xf32, #tpu.memory_space<vmem>>) attributes {dimension_semantics = [#tpu.dimension_semantics<arbitrary>, #tpu.dimension_semantics<arbitrary>], iteration_bounds = array<i64: 2, 1>, scalar_prefetch = 0 : i64, scratch_operands = 2 : i64, tpu.core_type = #tpu.core_type<tc>, window_params = [{transform_indices = @transform_0, window_bounds = array<i64: 1, 36, 128>}, {pipeline_mode = #tpu.pipeline_mode<synchronous>, transform_indices = @transform_1, window_bounds = array<i64: 8, 36>}, {pipeline_mode = #tpu.pipeline_mode<synchronous>, transform_indices = @transform_2, window_bounds = array<i64: 8, 1>}, {pipeline_mode = #tpu.pipeline_mode<synchronous>, transform_indices = @transform_3, window_bounds = array<i64: 8, 1>}, {pipeline_mode = #tpu.pipeline_mode<synchronous>, transform_indices = @transform_4, window_bounds = array<i64: 8, 2>}]} {
    %c0_i32 = arith.constant 0 : i32
    %0 = arith.cmpi eq, %arg0, %c0_i32 : i32
    %c0_i32_0 = arith.constant 0 : i32
    %1 = arith.cmpi eq, %arg1, %c0_i32_0 : i32
    %2 = arith.andi %0, %1 : i1
    %3 = arith.extui %2 : i1 to i32
    %c0_i32_1 = arith.constant 0 : i32
    %4 = arith.cmpi ne, %3, %c0_i32_1 : i32
    scf.if %4 {
      %cst_16 = arith.constant 0.000000e+00 : f32
      %21 = vector.broadcast %cst_16 : f32 to vector<8x128xf32>
      %c0_17 = arith.constant 0 : index
      %c0_18 = arith.constant 0 : index
      %22 = vector.load %arg7[%c0_17, %c0_18] : memref<8x128xf32, #tpu.memory_space<vmem>>, vector<8x128xf32>
      tpu.vector_store %arg7[%c0_17, %c0_18], %21 {strides = array<i32>} : memref<8x128xf32, #tpu.memory_space<vmem>>, vector<8x128xf32>,
      %cst_19 = arith.constant 0.000000e+00 : f32
      %23 = vector.broadcast %cst_19 : f32 to vector<8x128xf32>
      %c0_20 = arith.constant 0 : index
      %c0_21 = arith.constant 0 : index
      %24 = vector.load %arg8[%c0_20, %c0_21] : memref<8x128xf32, #tpu.memory_space<vmem>>, vector<8x128xf32>
      tpu.vector_store %arg8[%c0_20, %c0_21], %23 {strides = array<i32>} : memref<8x128xf32, #tpu.memory_space<vmem>>, vector<8x128xf32>,
    } else {
    }
    %c0 = arith.constant 0 : index
    %c0_2 = arith.constant 0 : index
    %5 = vector.load %arg3[%c0, %c0_2] : memref<8x36xf32, #tpu.memory_space<vmem>>, vector<8x36xf32>
    %c0_3 = arith.constant 0 : index
    %c0_4 = arith.constant 0 : index
    %c0_5 = arith.constant 0 : index
    %6 = vector.load %arg2[%c0_3, %c0_4, %c0_5] : memref<1x36x128xf32, #tpu.memory_space<vmem>>, vector<1x36x128xf32>
    %7 = vector.shape_cast %6 : vector<1x36x128xf32> to vector<36x128xf32>
    %cst = arith.constant dense<0.000000e+00> : vector<8x128xf32>
    %8 = tpu.matmul %5, %7, %cst {dimension_numbers = #tpu.dot_dimension_numbers<[1], [0], [0], [1], [0, 0, 1, 1], [], []>} : vector<8x36xf32>, vector<36x128xf32>, vector<8x128xf32> -> vector<8x128xf32>
    %c0_6 = arith.constant 0 : index
    %c0_7 = arith.constant 0 : index
    %9 = vector.load %arg7[%c0_6, %c0_7] : memref<8x128xf32, #tpu.memory_space<vmem>>, vector<8x128xf32>
    %10 = arith.addf %9, %8 : vector<8x128xf32>
    %c0_8 = arith.constant 0 : index
    %c0_9 = arith.constant 0 : index
    %11 = vector.load %arg7[%c0_8, %c0_9] : memref<8x128xf32, #tpu.memory_space<vmem>>, vector<8x128xf32>
    tpu.vector_store %arg7[%c0_8, %c0_9], %10 {strides = array<i32>} : memref<8x128xf32, #tpu.memory_space<vmem>>, vector<8x128xf32>,
    %c0_10 = arith.constant 0 : index
    %c0_11 = arith.constant 0 : index
    %12 = vector.load %arg8[%c0_10, %c0_11] : memref<8x128xf32, #tpu.memory_space<vmem>>, vector<8x128xf32>
    %13 = arith.mulf %8, %8 : vector<8x128xf32>
    %14 = arith.addf %12, %13 : vector<8x128xf32>
    %c0_12 = arith.constant 0 : index
    %c0_13 = arith.constant 0 : index
    %15 = vector.load %arg8[%c0_12, %c0_13] : memref<8x128xf32, #tpu.memory_space<vmem>>, vector<8x128xf32>
    tpu.vector_store %arg8[%c0_12, %c0_13], %14 {strides = array<i32>} : memref<8x128xf32, #tpu.memory_space<vmem>>, vector<8x128xf32>,
    %c1_i32 = arith.constant 1 : i32
    %16 = arith.cmpi eq, %arg0, %c1_i32 : i32
    %c0_i32_14 = arith.constant 0 : i32
    %17 = arith.cmpi eq, %arg1, %c0_i32_14 : i32
    %18 = arith.andi %16, %17 : i1
    %19 = arith.extui %18 : i1 to i32
    %c0_i32_15 = arith.constant 0 : i32
    %20 = arith.cmpi ne, %19, %c0_i32_15 : i32
    scf.if %20 {
      %c0_16 = arith.constant 0 : index
      %c0_17 = arith.constant 0 : index
      %21 = vector.load %arg7[%c0_16, %c0_17] : memref<8x128xf32, #tpu.memory_space<vmem>>, vector<8x128xf32>
      %cst_18 = arith.constant dense<0.000000e+00> : vector<8xf32>
      %22 = vector.multi_reduction <add>, %21, %cst_18 [1] : vector<8x128xf32> to vector<8xf32>
      %23 = vector.shape_cast %22 : vector<8xf32> to vector<8x1xf32>
      %c0_19 = arith.constant 0 : index
      %c0_20 = arith.constant 0 : index
      %24 = vector.load %arg8[%c0_19, %c0_20] : memref<8x128xf32, #tpu.memory_space<vmem>>, vector<8x128xf32>
      %cst_21 = arith.constant dense<0.000000e+00> : vector<8xf32>
      %25 = vector.multi_reduction <add>, %24, %cst_21 [1] : vector<8x128xf32> to vector<8xf32>
      %26 = vector.shape_cast %25 : vector<8xf32> to vector<8x1xf32>
      %cst_22 = arith.constant 7.812500e-03 : f32
      %27 = vector.broadcast %cst_22 : f32 to vector<8x1xf32>
      %28 = arith.mulf %23, %27 : vector<8x1xf32>
      %cst_23 = arith.constant 7.812500e-03 : f32
      %29 = vector.broadcast %cst_23 : f32 to vector<8x1xf32>
      %30 = arith.mulf %26, %29 : vector<8x1xf32>
      %31 = arith.mulf %28, %28 : vector<8x1xf32>
      %32 = arith.subf %30, %31 : vector<8x1xf32>
      %cst_24 = arith.constant 0.000000e+00 : f32
      %33 = vector.broadcast %cst_24 : f32 to vector<8x1xf32>
      %34 = arith.maximumf %32, %33 : vector<8x1xf32>
      %c0_25 = arith.constant 0 : index
      %c0_26 = arith.constant 0 : index
      %35 = vector.load %arg4[%c0_25, %c0_26] : memref<8x1xf32, #tpu.memory_space<vmem>>, vector<8x1xf32>
      %cst_27 = arith.constant 9.99999974E-6 : f32
      %36 = vector.broadcast %cst_27 : f32 to vector<8x1xf32>
      %37 = arith.addf %34, %36 : vector<8x1xf32>
      %38 = math.rsqrt %37 : vector<8x1xf32>
      %39 = arith.mulf %35, %38 : vector<8x1xf32>
      %c0_28 = arith.constant 0 : index
      %c0_29 = arith.constant 0 : index
      %40 = vector.load %arg5[%c0_28, %c0_29] : memref<8x1xf32, #tpu.memory_space<vmem>>, vector<8x1xf32>
      %41 = arith.mulf %28, %39 : vector<8x1xf32>
      %42 = arith.subf %40, %41 : vector<8x1xf32>
      %c0_30 = arith.constant 0 : index
      %c0_31 = arith.constant 0 : index
      %43 = vector.load %arg6[%c0_30, %c0_31] : memref<8x2xf32, #tpu.memory_space<vmem>>, vector<8x1xf32>
      tpu.vector_store %arg6[%c0_30, %c0_31], %39 {strides = array<i32>} : memref<8x2xf32, #tpu.memory_space<vmem>>, vector<8x1xf32>,
      %c0_32 = arith.constant 0 : index
      %c1 = arith.constant 1 : index
      %44 = vector.load %arg6[%c0_32, %c1] : memref<8x2xf32, #tpu.memory_space<vmem>>, vector<8x1xf32>
      tpu.vector_store %arg6[%c0_32, %c1], %42 {strides = array<i32>} : memref<8x2xf32, #tpu.memory_space<vmem>>, vector<8x1xf32>,
    } else {
    }
    return
  }
  func.func @transform_0(%arg0: i32, %arg1: i32) -> (i32, i32, i32) {
    %c0_i32 = arith.constant 0 : i32
    %c0_i32_0 = arith.constant 0 : i32
    return %arg0, %c0_i32, %arg1 : i32, i32, i32
  }
  func.func @transform_1(%arg0: i32, %arg1: i32) -> (i32, i32) {
    %c0_i32 = arith.constant 0 : i32
    %c0_i32_0 = arith.constant 0 : i32
    %c0_i32_1 = arith.constant 0 : i32
    return %c0_i32, %c0_i32_0 : i32, i32
  }
  func.func @transform_2(%arg0: i32, %arg1: i32) -> (i32, i32) {
    %c0_i32 = arith.constant 0 : i32
    %c0_i32_0 = arith.constant 0 : i32
    %c0_i32_1 = arith.constant 0 : i32
    return %c0_i32, %c0_i32_0 : i32, i32
  }
  func.func @transform_3(%arg0: i32, %arg1: i32) -> (i32, i32) {
    %c0_i32 = arith.constant 0 : i32
    %c0_i32_0 = arith.constant 0 : i32
    %c0_i32_1 = arith.constant 0 : i32
    return %c0_i32, %c0_i32_0 : i32, i32
  }
  func.func @transform_4(%arg0: i32, %arg1: i32) -> (i32, i32) {
    %c0_i32 = arith.constant 0 : i32
    %c0_i32_0 = arith.constant 0 : i32
    %c0_i32_1 = arith.constant 0 : i32
    return %c0_i32, %c0_i32_0 : i32, i32
  }
}

</mosaic_0001>

<llo_original>
// kernel: tpu_custom_call.1
$region0: #{tpu_custom_call.1}
  #allocation0 [shape = 'u32[]', space=smem, size = 0x4, offset = 0x4, fixed_abs, tag = 'smem constant byte address 0x4 - core index']
  #allocation1 [shape = 'u32[144,128]{1,0:T(1,128)}', space=vmem, size = 0x12000, scoped, tag = 'internal scratch']
  #allocation2 [shape = 'f32[8,128]{1,0:T(8,128)}', space=vmem, size = 0x1000, scoped, tag = 'scratch operand']
  #allocation3 [shape = 'f32[8,128]{1,0:T(8,128)}', space=vmem, size = 0x1000, scoped, tag = 'scratch operand']
  %s0 = inlined_call_operand.vmem [shape: f32[2,36,128], index: 0, kind: input, shape index: {}]
  %s1 = inlined_call_operand.vmem [shape: f32[8,36], index: 1, kind: input, shape index: {}]
  %s2 = inlined_call_operand.vmem [shape: f32[8,1], index: 2, kind: input, shape index: {}]
  %s3 = inlined_call_operand.vmem [shape: f32[8,1], index: 3, kind: input, shape index: {}]
  %s4 = inlined_call_operand.vmem [shape: f32[8,2], index: 4, kind: output, shape index: {}]
  %s5 = sld [smem:[#allocation0]]
  $region57: #{tpu_custom_call.1} parent=0
    _
  %s7 = ssub.s32 1, %s5
  %s8 = scalar_select 0, %s7, %s5
  loop: start=0, step=1, limit=4
  $region2: #{tpu_custom_call.1} parent=0 // loop_pre_header
    _
  $region3: #{tpu_custom_call.1} parent=0 // loop_header
    %s10 = sphi 0, %s14
    %p11 = scmp.ge.s32.totalorder %s10, 4
    %s17 = sphi 0, %s29
    %s18 = sphi 0, %s25
    %s19 = sphi 0, %s17
    %s20 = sphi 0, %s18
    %s21 = sphi 0, %s19
    %s22 = sphi 0, %s20
    %s34 = sphi 0, %s36
    %s37 = sphi 0, %s34
    %s38 = sphi 0, %s37
    %s54 = sphi 0, %s38
    %s58 = sphi 0, %s58
    %s60 = sphi 0, %s58
    %s61 = sphi 0, %s60
    %s75 = sphi 0, %s61
    %s79 = sphi 0, %s79
    %s81 = sphi 0, %s79
    %s82 = sphi 0, %s81
    %s96 = sphi 0, %s82
    %s100 = sphi 0, %s100
    %s102 = sphi 0, %s100
    %s103 = sphi 0, %s102
    %s117 = sphi 0, %s103
    %s121 = sphi 0, %s121
    %s123 = sphi 0, %s121
    %s124 = sphi 0, %s123
    %s138 = sphi 0, %s124
  $region4: #{tpu_custom_call.1} parent=0 // loop_header_branch
    %13 = sbr.rel (%p11) target = $region8
  $region5: #{tpu_custom_call.1} parent=0 // loop_body
    %s15 = ssub.s32 %s10, 1
    %s16 = ssub.s32 %s10, 2
    %s23 = sadd.s32 1, %s18
    %p24 = scmp.ge.s32.totalorder %s23, 1
    %s25 = scalar_select %p24, 0, %s23
    %s26 = sadd.s32 1, %s17
    %s27 = scalar_select %p24, %s26, %s17
    %p28 = scmp.ge.s32.totalorder %s27, 2
    %s29 = scalar_select %p28, 0, %s27
    %s30 = ssub.s32 %s17, %s29
    %s31 = ssub.s32 %s18, %s25
    %s32 = sor.u32 %s30, %s31
    %p33 = scmp.eq.s32.totalorder %s32, 0
    %s35 = sadd.s32 %s34, 1
    %s36 = scalar_select %p33, %s34, %s35
    %p39 = pneg %p33
    %p40 = scmp.eq.s32.totalorder %s10, 1
    %p41 = por %p39, %p40
    %p42 = scmp.ne.s32.totalorder %s34, %s37
    %p43 = scmp.eq.s32.totalorder %s10, 0
    %p44 = por %p42, %p43
    %p45 = scmp.ne.s32.totalorder %s34, %s37
    %p46 = scmp.eq.s32.totalorder %s15, 1
    %p47 = por %p45, %p46
    %p48 = scmp.ne.s32.totalorder %s37, %s38
    %p49 = scmp.eq.s32.totalorder %s15, 0
    %p50 = por %p48, %p49
    %p51 = scmp.ne.s32.totalorder %s37, %s38
    %p52 = scmp.eq.s32.totalorder %s16, 1
    %p53 = por %p51, %p52
    %p55 = scmp.ne.s32.totalorder %s38, %s54
    %p56 = scmp.eq.s32.totalorder %s16, 0
    %p57 = por %p55, %p56
    %s59 = sadd.s32 %s58, 1
    %p62 = scmp.eq.s32.totalorder %s10, 1
    %p63 = scmp.ne.s32.totalorder %s58, %s60
    %p64 = scmp.eq.s32.totalorder %s10, 0
    %p65 = por %p63, %p64
    %p66 = scmp.ne.s32.totalorder %s58, %s60
    %p67 = scmp.eq.s32.totalorder %s15, 1
    %p68 = por %p66, %p67
    %p69 = scmp.ne.s32.totalorder %s60, %s61
    %p70 = scmp.eq.s32.totalorder %s15, 0
    %p71 = por %p69, %p70
    %p72 = scmp.ne.s32.totalorder %s60, %s61
    %p73 = scmp.eq.s32.totalorder %s16, 1
    %p74 = por %p72, %p73
    %p76 = scmp.ne.s32.totalorder %s61, %s75
    %p77 = scmp.eq.s32.totalorder %s16, 0
    %p78 = por %p76, %p77
    %s80 = sadd.s32 %s79, 1
    %p83 = scmp.eq.s32.totalorder %s10, 1
    %p84 = scmp.ne.s32.totalorder %s79, %s81
    %p85 = scmp.eq.s32.totalorder %s10, 0
    %p86 = por %p84, %p85
    %p87 = scmp.ne.s32.totalorder %s79, %s81
    %p88 = scmp.eq.s32.totalorder %s15, 1
    %p89 = por %p87, %p88
    %p90 = scmp.ne.s32.totalorder %s81, %s82
    %p91 = scmp.eq.s32.totalorder %s15, 0
    %p92 = por %p90, %p91
    %p93 = scmp.ne.s32.totalorder %s81, %s82
    %p94 = scmp.eq.s32.totalorder %s16, 1
    %p95 = por %p93, %p94
    %p97 = scmp.ne.s32.totalorder %s82, %s96
    %p98 = scmp.eq.s32.totalorder %s16, 0
    %p99 = por %p97, %p98
    %s101 = sadd.s32 %s100, 1
    %p104 = scmp.eq.s32.totalorder %s10, 1
    %p105 = scmp.ne.s32.totalorder %s100, %s102
    %p106 = scmp.eq.s32.totalorder %s10, 0
    %p107 = por %p105, %p106
    %p108 = scmp.ne.s32.totalorder %s100, %s102
    %p109 = scmp.eq.s32.totalorder %s15, 1
    %p110 = por %p108, %p109
    %p111 = scmp.ne.s32.totalorder %s102, %s103
    %p112 = scmp.eq.s32.totalorder %s15, 0
    %p113 = por %p111, %p112
    %p114 = scmp.ne.s32.totalorder %s102, %s103
    %p115 = scmp.eq.s32.totalorder %s16, 1
    %p116 = por %p114, %p115
    %p118 = scmp.ne.s32.totalorder %s103, %s117
    %p119 = scmp.eq.s32.totalorder %s16, 0
    %p120 = por %p118, %p119
    %s122 = sadd.s32 %s121, 1
    %p125 = scmp.eq.s32.totalorder %s10, 1
    %p126 = scmp.ne.s32.totalorder %s121, %s123
    %p127 = scmp.eq.s32.totalorder %s10, 0
    %p128 = por %p126, %p127
    %p129 = scmp.ne.s32.totalorder %s121, %s123
    %p130 = scmp.eq.s32.totalorder %s15, 1
    %p131 = por %p129, %p130
    %p132 = scmp.ne.s32.totalorder %s123, %s124
    %p133 = scmp.eq.s32.totalorder %s15, 0
    %p134 = por %p132, %p133
    %p135 = scmp.ne.s32.totalorder %s123, %s124
    %p136 = scmp.eq.s32.totalorder %s16, 1
    %p137 = por %p135, %p136
    %p139 = scmp.ne.s32.totalorder %s124, %s138
    %p140 = scmp.eq.s32.totalorder %s16, 0
    %p141 = por %p139, %p140
    %p142 = scmp.le.s32.totalorder 1, %s10
    %p143 = scmp.lt.s32.totalorder %s10, 3
    %p144 = pnand %p142, %p143
    %p145 = pneg %p144
    // Predicated region
    $region9: #{tpu_custom_call.1} parent=5 // pred_check
      _
    $region10: #{tpu_custom_call.1} parent=5 // pred_check_branch
      %147 = sbr.rel (%p144) target = $region12
    $region11: #{tpu_custom_call.1} parent=5 // pred_region
      %s148 = ssub.s32 %s10, 1
      // Predicated region
      $region13: #{tpu_custom_call.1} parent=11 // pred_check
        %p149 = pneg %p71
      $region14: #{tpu_custom_call.1} parent=11 // pred_check_branch
        %151 = sbr.rel (%p149) target = $region16
      $region15: #{tpu_custom_call.1} parent=11 // pred_region
        _
      $region16: #{tpu_custom_call.1} parent=11 // pred_fallthru
        _
      // Predicated region
      $region17: #{tpu_custom_call.1} parent=11 // pred_check
        %p152 = pneg %p92
      $region18: #{tpu_custom_call.1} parent=11 // pred_check_branch
        %154 = sbr.rel (%p152) target = $region20
      $region19: #{tpu_custom_call.1} parent=11 // pred_region
        _
      $region20: #{tpu_custom_call.1} parent=11 // pred_fallthru
        _
      // Predicated region
      $region21: #{tpu_custom_call.1} parent=11 // pred_check
        %p155 = pneg %p113
      $region22: #{tpu_custom_call.1} parent=11 // pred_check_branch
        %157 = sbr.rel (%p155) target = $region24
      $region23: #{tpu_custom_call.1} parent=11 // pred_region
        _
      $region24: #{tpu_custom_call.1} parent=11 // pred_fallthru
        _
    $region12: #{tpu_custom_call.1} parent=5 // pred_fallthru
      _
    %p158 = scmp.lt.s32.totalorder %s10, 2
    // Predicated region
    $region25: #{tpu_custom_call.1} parent=5 // pred_check
      %p159 = pneg %p158
    $region26: #{tpu_custom_call.1} parent=5 // pred_check_branch
      %161 = sbr.rel (%p159) target = $region28
    $region27: #{tpu_custom_call.1} parent=5 // pred_region
      // Predicated region
      $region29: #{tpu_custom_call.1} parent=27 // pred_check
        %p162 = pneg %p44
      $region30: #{tpu_custom_call.1} parent=27 // pred_check_branch
        %164 = sbr.rel (%p162) target = $region32
      $region31: #{tpu_custom_call.1} parent=27 // pred_region
        %p165 = scmp.lt.s32.totalorder %s17, 1
        %s166 = scalar_select %p165, %s17, 1
        %p167 = scmp.lt.s32.totalorder %s18, 0
        %s168 = scalar_select %p167, %s18, 0
        %s169 = smul.addr %s166, 5
        %s170 = sadd.s32 %s168, %s169
        %s171 = smul.addr %s170, 8
        %s172 = scalar_lea.vmem %s0, %s171
      $region32: #{tpu_custom_call.1} parent=27 // pred_fallthru
        _
    $region28: #{tpu_custom_call.1} parent=5 // pred_fallthru
      _
    %p173 = scmp.le.s32.totalorder 1, %s10
    %p174 = scmp.lt.s32.totalorder %s10, 3
    %p175 = pnand %p173, %p174
    %p176 = pneg %p175
    // Predicated region
    $region33: #{tpu_custom_call.1} parent=5 // pred_check
      _
    $region34: #{tpu_custom_call.1} parent=5 // pred_check_branch
      %178 = sbr.rel (%p175) target = $region36
    $region35: #{tpu_custom_call.1} parent=5 // pred_region
      %s179 = ssub.s32 %s10, 1
      %p180 = scmp.lt.s32.totalorder %s19, 1
      %s181 = scalar_select %p180, %s19, 1
      %p182 = scmp.lt.s32.totalorder %s20, 0
      %s183 = scalar_select %p182, %s20, 0
      %s184 = smul.addr %s181, 5
      %s185 = sadd.s32 %s183, %s184
      %s186 = smul.addr %s185, 8
      %s187 = scalar_lea.vmem %s0, %s186
      %p188 = pneg %p50
      %p189 = pneg %p47
      %p190 = pneg %p71
      %p191 = pneg %p68
      %p192 = pneg %p92
      %p193 = pneg %p89
      %p194 = pneg %p113
      %p195 = pneg %p110
      %p196 = pneg %p134
      %p197 = pneg %p131
      %p198 = scmp.lt.s32.totalorder %s19, 1
      %s199 = scalar_select %p198, %s19, 1
      %p200 = scmp.lt.s32.totalorder %s20, 0
      %s201 = scalar_select %p200, %s20, 0
      %s202 = smul.addr %s199, 5
      %s203 = sadd.s32 %s201, %s202
      %s204 = smul.addr %s203, 8
      %s205 = scalar_lea.vmem %s0, %s204
      %p206 = scmp.eq.s32.totalorder %s19, 0
      %p207 = scmp.eq.s32.totalorder %s20, 0
      %p208 = pnand %p206, %p207
      %p209 = pneg %p208
      // Predicated region
      $region37: #{tpu_custom_call.1} parent=35 // pred_check
        _
      $region38: #{tpu_custom_call.1} parent=35 // pred_check_branch
        %211 = sbr.rel (%p208) target = $region40
      $region39: #{tpu_custom_call.1} parent=35 // pred_region
        %212 = vst [vmem:[#allocation2] sm:$0xff] 0.0
        %213 = vst [vmem:[#allocation3] sm:$0xff] 0.0
      $region40: #{tpu_custom_call.1} parent=35 // pred_fallthru
        _
      %v214 = vld [vmem:[%s1] sm:$0xff]
      %v215 = vld [vmem:[%s205] sm:$0xff]
      %v216 = vld [vmem:[%s205 + $0x8] sm:$0xff]
      %v217 = vld [vmem:[%s205 + $0x10] sm:$0xff]
      %v218 = vld [vmem:[%s205 + $0x18] sm:$0xff]
      %v219 = vld [vmem:[%s205 + $0x20] sm:$0xf]
      %vm220 = vcmask 293888
      %v222 = vsel %vm220, %v214, 0
      %vm224 = vcmask 1043456
      %v226 = vsel %vm224, %v219, 0
      %228 = vmatprep.subr.mxu0 0.0
      %229 = vmatpush1.msra.mxu0 %v215
      %230 = vmatprep.subr.mxu0 0.0
      %231 = vmatpush1.msra.mxu0 %v216
      %232 = vmatprep.subr.mxu0 0.0
      %233 = vmatpush1.msra.mxu0 %v217
      %234 = vmatprep.subr.mxu0 0.0
      %235 = vmatpush1.msra.mxu0 %v218
      %236 = vmatprep.subr.mxu0 0.0
      %237 = vmatpush1.msra.mxu0 %v226
      %238 = vmatprep.subr.mxu0 0.0
      %239 = vmatpush1.msra.mxu0 0.0
      %240 = vmatprep.subr.mxu0 0.0
      %241 = vmatpush1.msra.mxu0 0.0
      %242 = vmatprep.subr.mxu0 0.0
      %243 = vmatpush1.msra.mxu0 0.0
      %244 = vmatprep.subr.mxu0 0.0
      %245 = vmatpush1.msra.mxu0 0.0
      %246 = vmatprep.subr.mxu0 0.0
      %247 = vmatpush1.msra.mxu0 0.0
      %248 = vmatprep.subr.mxu0 0.0
      %249 = vmatpush1.msra.mxu0 0.0
      %250 = vmatprep.subr.mxu0 0.0
      %251 = vmatpush1.msra.mxu0 0.0
      %252 = vmatprep.subr.mxu0 0.0
      %253 = vmatpush1.msra.mxu0 0.0
      %254 = vmatprep.subr.mxu0 0.0
      %255 = vmatpush1.msra.mxu0 0.0
      %256 = vmatprep.subr.mxu0 0.0
      %257 = vmatpush1.msra.mxu0 0.0
      %258 = vmatprep.subr.mxu0 0.0
      %259 = vmatpush1.msra.mxu0 0.0
      %260 = vmatprep.subr.mxu0 0.0
      %261 = vmatpush1.msra.mxu0 0.0
      %262 = vmatprep.subr.mxu0 0.0
      %263 = vmatpush1.msra.mxu0 0.0
      %264 = vmatprep.subr.mxu0 0.0
      %265 = vmatpush1.msra.mxu0 0.0
      %266 = vmatprep.subr.mxu0 0.0
      %267 = vmatpush1.msra.mxu0 0.0
      %268 = vmatprep.subr.mxu0 0.0
      %269 = vmatpush1.msra.mxu0 0.0
      %270 = vmatprep.subr.mxu0 0.0
      %271 = vmatpush1.msra.mxu0 0.0
      %272 = vmatprep.subr.mxu0 0.0
      %273 = vmatpush1.msra.mxu0 0.0
      %274 = vmatprep.subr.mxu0 0.0
      %275 = vmatpush1.msra.mxu0 0.0
      %276 = vmatprep.subr.mxu0 0.0
      %277 = vmatpush1.msra.mxu0 0.0
      %278 = vmatprep.subr.mxu0 0.0
      %279 = vmatpush1.msra.mxu0 0.0
      %280 = vmatprep.subr.mxu0 0.0
      %281 = vmatpush1.msra.mxu0 0.0
      %282 = vmatprep.subr.mxu0 0.0
      %283 = vmatpush1.msra.mxu0 0.0
      %284 = vmatprep.subr.mxu0 0.0
      %285 = vmatpush1.msra.mxu0 0.0
      %286 = vmatprep.subr.mxu0 0.0
      %287 = vmatpush1.msra.mxu0 0.0
      %288 = vmatprep.subr.mxu0 0.0
      %289 = vmatpush1.msra.mxu0 0.0
      %290 = vmatprep.subr.mxu0 0.0
      %291 = vmatpush1.msra.mxu0 0.0
      %292 = vmatprep.mubr.f32.mxu0 0.0
      %293 = vmatmul.mubr.f32.gmra.mrb[0].mxu0 %v222
      %v294 = vpop.f32.mrb[0].mxu0
      %v295 = vadd.f32 0.0, %v294
      %v296 = vpop.f32.mrb[0].mxu0
      %297 = vdwg.mxu0
      %v298 = vld [vmem:[#allocation2] sm:$0xff]
      %v299 = vadd.f32 %v298, %v295
      %300 = vst [vmem:[#allocation2] sm:$0xff] %v299
      %v301 = vld [vmem:[#allocation3] sm:$0xff]
      %v302 = vmul.f32 %v295, %v295
      %v303 = vadd.f32 %v301, %v302
      %304 = vst [vmem:[#allocation3] sm:$0xff] %v303
      %p305 = scmp.eq.s32.totalorder %s19, 1
      %p306 = pnand %p305, %p207
      %p307 = pneg %p306
      // Predicated region
      $region41: #{tpu_custom_call.1} parent=35 // pred_check
        _
      $region42: #{tpu_custom_call.1} parent=35 // pred_check_branch
        %309 = sbr.rel (%p306) target = $region44
      $region43: #{tpu_custom_call.1} parent=35 // pred_region
        %v310 = vld [vmem:[#allocation2] sm:$0xff]
        %311 = vadd.xlane.f32.xlu0 %v310
        %v312 = vpop.xlane.xlu0 %311
        %v313 = vld [vmem:[#allocation3] sm:$0xff]
        %314 = vadd.xlane.f32.xlu0 %v313
        %v315 = vpop.xlane.xlu0 %314
        %v316 = vmul.f32 %v312, 0.0078125
        %v317 = vmul.f32 %v315, 0.0078125
        %v318 = vmul.f32 %v316, %v316
        %v319 = vsub.f32 %v317, %v318
        %v320 = vmax.f32 %v319, 0.0
        %v321 = vld [vmem:[%s2] sm:$0xff]
        %v322 = vadd.f32 %v320, 1e-05
        %v323 = vrsqrt.pop %v322
        %v324 = vmul.f32 %v321, %v323
        %v325 = vld [vmem:[%s3] sm:$0xff]
        %v326 = vmul.f32 %v316, %v324
        %v327 = vsub.f32 %v325, %v326
        %vm328 = vcmask 7168
        %329 = vst.msk [vmem:[%s4] sm:$0xff] %vm328, %v324
        %331 = vrot.lane.b32.xlu0 %v327, 1
        %v332 = vpop.permute.xlu0 %331
        %vm334 = vcmask 15368
        %335 = vst.msk [vmem:[%s4] sm:$0xff] %vm334, %v332
      $region44: #{tpu_custom_call.1} parent=35 // pred_fallthru
        _
      // Predicated region
      $region45: #{tpu_custom_call.1} parent=35 // pred_check
        %p336 = pneg %p131
      $region46: #{tpu_custom_call.1} parent=35 // pred_check_branch
        %338 = sbr.rel (%p336) target = $region48
      $region47: #{tpu_custom_call.1} parent=35 // pred_region
        _
      $region48: #{tpu_custom_call.1} parent=35 // pred_fallthru
        _
      // Predicated region
      $region49: #{tpu_custom_call.1} parent=35 // pred_check
        %p339 = pneg %p131
      $region50: #{tpu_custom_call.1} parent=35 // pred_check_branch
        %341 = sbr.rel (%p339) target = $region52
      $region51: #{tpu_custom_call.1} parent=35 // pred_region
        _
      $region52: #{tpu_custom_call.1} parent=35 // pred_fallthru
        _
    $region36: #{tpu_custom_call.1} parent=5 // pred_fallthru
      _
    %p342 = scmp.le.s32.totalorder 2, %s10
    // Predicated region
    $region53: #{tpu_custom_call.1} parent=5 // pred_check
      %p343 = pneg %p342
    $region54: #{tpu_custom_call.1} parent=5 // pred_check_branch
      %345 = sbr.rel (%p343) target = $region56
    $region55: #{tpu_custom_call.1} parent=5 // pred_region
      %s346 = ssub.s32 %s10, 2
    $region56: #{tpu_custom_call.1} parent=5 // pred_fallthru
      _
  $region6: #{tpu_custom_call.1} parent=0 // loop_footer
    %s14 = sadd.s32 1, %s10
  $region7: #{tpu_custom_call.1} parent=0 // loop_footer_branch
    %9 = sbr.rel target = $region3
  $region8: #{tpu_custom_call.1} parent=0 // loop_exit
    _

</llo_original>
